<compile_context>
chip_gen: v5e
topology: v5e:2x2
jax: 0.10.0
libtpu: 0.0.40
codegen_flags: <defaults>
</compile_context>

<pallas_src>
import functools

import jax
import jax.numpy as jnp
from jax.experimental import pallas as pl
from jax.experimental.pallas import tpu as pltpu

NUM_CLASSES = 3   # nn.Embedding(3, 1)
EMB_DIM = 1
OUT_DIM = 4       # final Linear(hidden, 4)
LANE = 128        # TPU lane width
SUBLANE = 8       # f32 sublane count


def _round_up(x, m):
    return (x + m - 1) // m * m


def generator_kernel(x_ref, labels_ref, w1_ref, bias_ref, w2_ref, b2_ref,
                     out_ref):
    """Fused Generator forward on one (TILE_B, ...) batch tile.

       h   = relu(x @ W1_pad + bias_per_class[label])     # embedding+cat folded
       z   = h @ W2_pad + b2                               # lane-dense MXU matmul
       out = tanh(z[:, :OUT_DIM])                          # narrow EUP + store
    """
    x = x_ref[...]                                  # (TB, noise_dim) f32
    lab = labels_ref[...]                           # (TB, 1) int32

    # Per-class first-layer bias selected on the VPU (replaces the degenerate
    # one_hot @ emb and emb @ W1e MXU matmuls of the original formulation).
    b_c0 = bias_ref[0:1, :]                         # (1, H_pad)
    b_c1 = bias_ref[1:2, :]
    b_c2 = bias_ref[2:3, :]
    fbias = jnp.where(lab == 0, b_c0,
                      jnp.where(lab == 1, b_c1, b_c2))   # (TB, H_pad)

    # First Linear + ReLU (lane-dense hidden; zero-padded columns stay 0).
    h = jnp.dot(x, w1_ref[...], preferred_element_type=jnp.float32) + fbias
    h = jnp.maximum(h, 0.0)                         # (TB, H_pad)

    # Second Linear: lane-dense MXU matmul, then tanh + store only the 4 real
    # output columns (no 128-wide writeback, no 128-wide transcendentals).
    z = jnp.dot(h, w2_ref[...], preferred_element_type=jnp.float32) + b2_ref[...]
    out_ref[...] = jnp.tanh(z[:, :OUT_DIM])         # (TB, OUT_DIM)


@functools.partial(jax.jit, static_argnames=("tile_b_max",))
def generator_forward(x, labels, params, *, tile_b_max=8192):
    """x: (B, noise_dim) f32, labels: (B,) int in {0,1,2} -> (B, 4) f32."""
    B, noise_dim = x.shape
    hidden = params["b1"].shape[-1]

    h_pad = _round_up(hidden, LANE)
    out_pad = LANE  # lane-dense second matmul; only [:OUT_DIM] is used/stored

    # --- wrapper-side precompute (O(3*hidden), negligible) -----------------
    # Fold Embedding + cat into a per-class first-layer bias.
    bias_per_class = params["emb"] @ params["w1e"] + params["b1"]  # (3, hidden)

    # Zero-pad feature dims to the 128-lane width (keeps both matmuls
    # lane-dense on the MXU; padded hidden columns are exactly 0 after relu).
    w1 = jnp.zeros((noise_dim, h_pad), jnp.float32).at[:, :hidden].set(
        params["w1x"])
    bias = jnp.zeros((NUM_CLASSES, h_pad), jnp.float32).at[:, :hidden].set(
        bias_per_class)
    w2 = jnp.zeros((h_pad, out_pad), jnp.float32).at[:hidden, :OUT_DIM].set(
        params["w2"])
    b2 = jnp.zeros((1, out_pad), jnp.float32).at[:, :OUT_DIM].set(params["b2"])

    # Labels as a (B, 1) int32 column (tiny reshape; no full-array padding).
    lab2d = labels.astype(jnp.int32).reshape(B, 1)

    # Tile the batch axis. No wrapper padding: Pallas pads ragged edge reads
    # and masks edge writes (safe: every op is row-wise, no cross-row reduce).
    tile_b = min(tile_b_max, _round_up(B, SUBLANE))
    if B >= 2 * SUBLANE:
        # v7x megacore: guarantee >= 2 grid steps on the 'parallel' batch axis.
        tile_b = min(tile_b, _round_up(pl.cdiv(B, 2), SUBLANE))
    grid = (pl.cdiv(B, tile_b),)

    out = pl.pallas_call(
        generator_kernel,
        out_shape=jax.ShapeDtypeStruct((B, OUT_DIM), jnp.float32),
        grid_spec=pltpu.PrefetchScalarGridSpec(
            num_scalar_prefetch=0,
            grid=grid,
            in_specs=[
                # streaming per-tile inputs
                pl.BlockSpec((tile_b, noise_dim), lambda i: (i, 0)),
                pl.BlockSpec((tile_b, 1), lambda i: (i, 0)),
                # weights: constant block index -> DMA'd once, VMEM-resident
                pl.BlockSpec((noise_dim, h_pad), lambda i: (0, 0)),
                pl.BlockSpec((NUM_CLASSES, h_pad), lambda i: (0, 0)),
                pl.BlockSpec((h_pad, out_pad), lambda i: (0, 0)),
                pl.BlockSpec((1, out_pad), lambda i: (0, 0)),
            ],
            # narrow output block: full last dim (OUT_DIM) is legal; stores are
            # masked vst but HBM writeback is 32x smaller than a 128-wide slab.
            out_specs=pl.BlockSpec((tile_b, OUT_DIM), lambda i: (i, 0)),
        ),
        compiler_params=pltpu.CompilerParams(
            dimension_semantics=("parallel",),        # 2 TCs on v7x
            vmem_limit_bytes=32 * 1024 * 1024,        # safe on v5e/v6e/v7x
        ),
    )(x, lab2d, w1, bias, w2, b2)

    return out


def init_params(key, noise_dim, hidden_nodes):
    """Deterministic synthetic parameters (PyTorch-style uniform fan-in init).
    Linear weights stored as (in, out) so the kernel does x @ W + b directly."""
    k_emb, k_w1, k_b1, k_w2, k_b2 = jax.random.split(key, 5)
    fan1 = noise_dim + 1
    fan2 = hidden_nodes
    lim1 = 1.0 / jnp.sqrt(fan1)
    lim2 = 1.0 / jnp.sqrt(fan2)
    w1 = jax.random.uniform(k_w1, (fan1, hidden_nodes), jnp.float32, -lim1, lim1)
    return {
        "emb": jax.random.normal(k_emb, (NUM_CLASSES, EMB_DIM), jnp.float32),
        "w1x": w1[:noise_dim],                       # (noise_dim, hidden)
        "w1e": w1[noise_dim:],                       # (1, hidden)
        "b1": jax.random.uniform(k_b1, (1, hidden_nodes), jnp.float32, -lim1, lim1),
        "w2": jax.random.uniform(k_w2, (hidden_nodes, OUT_DIM), jnp.float32, -lim2, lim2),
        "b2": jax.random.uniform(k_b2, (1, OUT_DIM), jnp.float32, -lim2, lim2),
    }


def generator_ref(x, labels, params):
    """Plain-JAX reference matching the PyTorch forward exactly."""
    emb = params["emb"][labels]                        # (B, 1)
    xin = jnp.concatenate([x, emb], axis=1)            # (B, noise_dim + 1)
    w1 = jnp.concatenate([params["w1x"], params["w1e"]], axis=0)
    h = jnp.maximum(xin @ w1 + params["b1"], 0.0)
    return jnp.tanh(h @ params["w2"] + params["b2"])


if __name__ == "__main__":
    noise_dim = 8
    hidden_nodes = 32
    batch = 4

    key = jax.random.PRNGKey(0)
    k_params, k_x, k_lab = jax.random.split(key, 3)

    params = init_params(k_params, noise_dim, hidden_nodes)
    x = jax.random.normal(k_x, (batch, noise_dim), jnp.float32)
    labels = jax.random.randint(k_lab, (batch,), 0, NUM_CLASSES, jnp.int32)

    out = generator_forward(x, labels, params)
    out = jax.block_until_ready(out)

    ref = generator_ref(x, labels, params)
    assert out.shape == (batch, OUT_DIM)
    assert jnp.allclose(out, ref, atol=1e-5, rtol=1e-5), "mismatch vs reference"
    print("KERNEL_OK")
</pallas_src>

<mosaic_0001>
module attributes {stable_mosaic.version = 11 : i64} {
  func.func @generator_kernel(%arg0: i32, %arg1: memref<8x8xf32, #tpu.memory_space<vmem>>, %arg2: memref<8x1xi32, #tpu.memory_space<vmem>>, %arg3: memref<8x128xf32, #tpu.memory_space<vmem>>, %arg4: memref<3x128xf32, #tpu.memory_space<vmem>>, %arg5: memref<128x128xf32, #tpu.memory_space<vmem>>, %arg6: memref<1x128xf32, #tpu.memory_space<vmem>>, %arg7: memref<8x4xf32, #tpu.memory_space<vmem>>) attributes {dimension_semantics = [#tpu.dimension_semantics<parallel>], iteration_bounds = array<i64: 1>, scalar_prefetch = 0 : i64, scratch_operands = 0 : i64, tpu.core_type = #tpu.core_type<tc>, window_params = [{transform_indices = @transform_0, window_bounds = array<i64: 8, 8>}, {transform_indices = @transform_1, window_bounds = array<i64: 8, 1>}, {pipeline_mode = #tpu.pipeline_mode<synchronous>, transform_indices = @transform_2, window_bounds = array<i64: 8, 128>}, {pipeline_mode = #tpu.pipeline_mode<synchronous>, transform_indices = @transform_3, window_bounds = array<i64: 3, 128>}, {pipeline_mode = #tpu.pipeline_mode<synchronous>, transform_indices = @transform_4, window_bounds = array<i64: 128, 128>}, {pipeline_mode = #tpu.pipeline_mode<synchronous>, transform_indices = @transform_5, window_bounds = array<i64: 1, 128>}, {transform_indices = @transform_6, window_bounds = array<i64: 8, 4>}]} {
    %c0 = arith.constant 0 : index
    %c0_0 = arith.constant 0 : index
    %0 = vector.load %arg1[%c0, %c0_0] : memref<8x8xf32, #tpu.memory_space<vmem>>, vector<8x8xf32>
    %c0_1 = arith.constant 0 : index
    %c0_2 = arith.constant 0 : index
    %1 = vector.load %arg2[%c0_1, %c0_2] : memref<8x1xi32, #tpu.memory_space<vmem>>, vector<8x1xi32>
    %c0_3 = arith.constant 0 : index
    %c0_4 = arith.constant 0 : index
    %2 = vector.load %arg4[%c0_3, %c0_4] : memref<3x128xf32, #tpu.memory_space<vmem>>, vector<1x128xf32>
    %c1 = arith.constant 1 : index
    %c0_5 = arith.constant 0 : index
    %3 = vector.load %arg4[%c1, %c0_5] : memref<3x128xf32, #tpu.memory_space<vmem>>, vector<1x128xf32>
    %c2 = arith.constant 2 : index
    %c0_6 = arith.constant 0 : index
    %4 = vector.load %arg4[%c2, %c0_6] : memref<3x128xf32, #tpu.memory_space<vmem>>, vector<1x128xf32>
    %c0_i32 = arith.constant 0 : i32
    %5 = vector.broadcast %c0_i32 : i32 to vector<8x1xi32>
    %6 = arith.cmpi eq, %1, %5 : vector<8x1xi32>
    %c1_i32 = arith.constant 1 : i32
    %7 = vector.broadcast %c1_i32 : i32 to vector<8x1xi32>
    %8 = arith.cmpi eq, %1, %7 : vector<8x1xi32>
    %9 = vector.shape_cast %8 : vector<8x1xi1> to vector<8x1xi1>
    %10 = vector.broadcast %9 : vector<8x1xi1> to vector<8x128xi1>
    %11 = vector.shape_cast %3 : vector<1x128xf32> to vector<1x128xf32>
    %12 = vector.broadcast %11 : vector<1x128xf32> to vector<8x128xf32>
    %13 = vector.shape_cast %4 : vector<1x128xf32> to vector<1x128xf32>
    %14 = vector.broadcast %13 : vector<1x128xf32> to vector<8x128xf32>
    %15 = arith.select %10, %12, %14 : vector<8x128xi1>, vector<8x128xf32>
    %16 = vector.shape_cast %6 : vector<8x1xi1> to vector<8x1xi1>
    %17 = vector.broadcast %16 : vector<8x1xi1> to vector<8x128xi1>
    %18 = vector.shape_cast %2 : vector<1x128xf32> to vector<1x128xf32>
    %19 = vector.broadcast %18 : vector<1x128xf32> to vector<8x128xf32>
    %20 = arith.select %17, %19, %15 : vector<8x128xi1>, vector<8x128xf32>
    %c0_7 = arith.constant 0 : index
    %c0_8 = arith.constant 0 : index
    %21 = vector.load %arg3[%c0_7, %c0_8] : memref<8x128xf32, #tpu.memory_space<vmem>>, vector<8x128xf32>
    %cst = arith.constant dense<0.000000e+00> : vector<8x128xf32>
    %22 = tpu.matmul %0, %21, %cst {dimension_numbers = #tpu.dot_dimension_numbers<[1], [0], [0], [1], [0, 0, 1, 1], [], []>} : vector<8x8xf32>, vector<8x128xf32>, vector<8x128xf32> -> vector<8x128xf32>
    %23 = arith.addf %22, %20 : vector<8x128xf32>
    %cst_9 = arith.constant 0.000000e+00 : f32
    %24 = vector.broadcast %cst_9 : f32 to vector<8x128xf32>
    %25 = arith.maximumf %23, %24 : vector<8x128xf32>
    %c0_10 = arith.constant 0 : index
    %c0_11 = arith.constant 0 : index
    %26 = vector.load %arg5[%c0_10, %c0_11] : memref<128x128xf32, #tpu.memory_space<vmem>>, vector<128x128xf32>
    %cst_12 = arith.constant dense<0.000000e+00> : vector<8x128xf32>
    %27 = tpu.matmul %25, %26, %cst_12 {dimension_numbers = #tpu.dot_dimension_numbers<[1], [0], [0], [1], [0, 0, 1, 1], [], []>} : vector<8x128xf32>, vector<128x128xf32>, vector<8x128xf32> -> vector<8x128xf32>
    %c0_13 = arith.constant 0 : index
    %c0_14 = arith.constant 0 : index
    %28 = vector.load %arg6[%c0_13, %c0_14] : memref<1x128xf32, #tpu.memory_space<vmem>>, vector<1x128xf32>
    %29 = vector.broadcast %28 : vector<1x128xf32> to vector<8x128xf32>
    %30 = arith.addf %27, %29 : vector<8x128xf32>
    %31 = vector.extract_strided_slice %30 {offsets = [0, 0], sizes = [8, 4], strides = [1, 1]} : vector<8x128xf32> to vector<8x4xf32>
    %32 = math.tanh %31 : vector<8x4xf32>
    %c0_15 = arith.constant 0 : index
    %c0_16 = arith.constant 0 : index
    %33 = vector.load %arg7[%c0_15, %c0_16] : memref<8x4xf32, #tpu.memory_space<vmem>>, vector<8x4xf32>
    tpu.vector_store %arg7[%c0_15, %c0_16], %32 {strides = array<i32>} : memref<8x4xf32, #tpu.memory_space<vmem>>, vector<8x4xf32>,
    return
  }
  func.func @transform_0(%arg0: i32) -> (i32, i32) {
    %c0_i32 = arith.constant 0 : i32
    %c0_i32_0 = arith.constant 0 : i32
    return %arg0, %c0_i32 : i32, i32
  }
  func.func @transform_1(%arg0: i32) -> (i32, i32) {
    %c0_i32 = arith.constant 0 : i32
    %c0_i32_0 = arith.constant 0 : i32
    return %arg0, %c0_i32 : i32, i32
  }
  func.func @transform_2(%arg0: i32) -> (i32, i32) {
    %c0_i32 = arith.constant 0 : i32
    %c0_i32_0 = arith.constant 0 : i32
    %c0_i32_1 = arith.constant 0 : i32
    return %c0_i32, %c0_i32_0 : i32, i32
  }
  func.func @transform_3(%arg0: i32) -> (i32, i32) {
    %c0_i32 = arith.constant 0 : i32
    %c0_i32_0 = arith.constant 0 : i32
    %c0_i32_1 = arith.constant 0 : i32
    return %c0_i32, %c0_i32_0 : i32, i32
  }
  func.func @transform_4(%arg0: i32) -> (i32, i32) {
    %c0_i32 = arith.constant 0 : i32
    %c0_i32_0 = arith.constant 0 : i32
    %c0_i32_1 = arith.constant 0 : i32
    return %c0_i32, %c0_i32_0 : i32, i32
  }
  func.func @transform_5(%arg0: i32) -> (i32, i32) {
    %c0_i32 = arith.constant 0 : i32
    %c0_i32_0 = arith.constant 0 : i32
    %c0_i32_1 = arith.constant 0 : i32
    return %c0_i32, %c0_i32_0 : i32, i32
  }
  func.func @transform_6(%arg0: i32) -> (i32, i32) {
    %c0_i32 = arith.constant 0 : i32
    %c0_i32_0 = arith.constant 0 : i32
    return %arg0, %c0_i32 : i32, i32
  }
}

</mosaic_0001>

<llo_original>
// kernel: generator_forward.1
$region0: #{generator_forward.1}
  #allocation0 [shape = 'u32[]', space=smem, size = 0x4, offset = 0x4, fixed_abs, tag = 'smem constant byte address 0x4 - core index']
  #allocation1 [shape = 'u32[72,128]{1,0:T(1,128)}', space=vmem, size = 0x9000, scoped, tag = 'internal scratch']
  %s0 = inlined_call_operand.vmem [shape: f32[4,8], index: 0, kind: input, shape index: {}]
  %s1 = inlined_call_operand.vmem [shape: s32[4,1], index: 1, kind: input, shape index: {}]
  %s2 = inlined_call_operand.vmem [shape: f32[8,128], index: 2, kind: input, shape index: {}]
  %s3 = inlined_call_operand.vmem [shape: f32[3,128], index: 3, kind: input, shape index: {}]
  %s4 = inlined_call_operand.vmem [shape: f32[128,128], index: 4, kind: input, shape index: {}]
  %s5 = inlined_call_operand.vmem [shape: f32[1,128], index: 5, kind: input, shape index: {}]
  %s6 = inlined_call_operand.hbm [shape: f32[4,4], index: 6, kind: output, shape index: {}]
  %s7 = sld [smem:[#allocation0]]
  $region34: #{generator_forward.1} parent=0
    _
  %s9 = ssub.s32 1, %s7
  %s10 = scalar_select 0, %s9, %s7
  $region1: #{generator_forward.1} parent=0
    #allocation2 [shape = 'u8[4096]{0}', space=vmem, size = 0x1000, scoped, tag = 'output window, operand 0, single buffered']
    #allocation3 [shape = 's32[1]{0}', space=sflag, size = 0x4, scoped, tag = 'scoped memory for generator_forward.1']
    %11 = vsyncpa [#allocation3], 0
    // Predicated region
    $region2: #{generator_forward.1} parent=1 // pred_check
      _
    $region3: #{generator_forward.1} parent=1 // pred_check_branch
      %13 = sbr.rel (0) target = $region5
    $region4: #{generator_forward.1} parent=1 // pred_region
      _
    $region5: #{generator_forward.1} parent=1 // pred_fallthru
      _
    // Predicated region
    $region6: #{generator_forward.1} parent=1 // pred_check
      _
    $region7: #{generator_forward.1} parent=1 // pred_check_branch
      %15 = sbr.rel (0) target = $region9
    $region8: #{generator_forward.1} parent=1 // pred_region
      _
    $region9: #{generator_forward.1} parent=1 // pred_fallthru
      _
    // Predicated region
    $region10: #{generator_forward.1} parent=1 // pred_check
      _
    $region11: #{generator_forward.1} parent=1 // pred_check_branch
      %17 = sbr.rel (0) target = $region13
    $region12: #{generator_forward.1} parent=1 // pred_region
      _
    $region13: #{generator_forward.1} parent=1 // pred_fallthru
      _
    // Predicated region
    $region14: #{generator_forward.1} parent=1 // pred_check
      _
    $region15: #{generator_forward.1} parent=1 // pred_check_branch
      %19 = sbr.rel (0) target = $region17
    $region16: #{generator_forward.1} parent=1 // pred_region
      _
    $region17: #{generator_forward.1} parent=1 // pred_fallthru
      _
    // Predicated region
    $region18: #{generator_forward.1} parent=1 // pred_check
      _
    $region19: #{generator_forward.1} parent=1 // pred_check_branch
      %21 = sbr.rel (0) target = $region21
    $region20: #{generator_forward.1} parent=1 // pred_region
      _
    $region21: #{generator_forward.1} parent=1 // pred_fallthru
      _
    // Predicated region
    $region22: #{generator_forward.1} parent=1 // pred_check
      _
    $region23: #{generator_forward.1} parent=1 // pred_check_branch
      %23 = sbr.rel (0) target = $region25
    $region24: #{generator_forward.1} parent=1 // pred_region
      _
    $region25: #{generator_forward.1} parent=1 // pred_fallthru
      _
    %v24 = vld [vmem:[%s0] sm:$0xff]
    %v25 = vld [vmem:[%s1] sm:$0xff]
    %v26 = vld [vmem:[%s3] sm:$0x1]
    %v27 = vld [vmem:[%s3 + $0x1] sm:$0x1]
    %v28 = vld [vmem:[%s3 + $0x2] sm:$0x1]
    %vm29 = vcmp.eq.s32.totalorder %v25, 0
    %vm30 = vcmp.eq.s32.totalorder %v25, 1
    %v31 = vsel %vm30, 1, 0
    %32 = vset.pattern.permute.xlu0 0
    %33 = vperm.xlu0 %32, %v31
    %v34 = vpop.permute.xlu0 %33
    %vm35 = vcmp.eq.s32.totalorder %v34, 1
    %v36 = vperm.slane %v27, 0
    %v37 = vperm.slane %v28, 0
    %v38 = vsel %vm35, %v36, %v37
    %v39 = vsel %vm29, 1, 0
    %40 = vset.pattern.permute.xlu0 0
    %41 = vperm.xlu0 %40, %v39
    %v42 = vpop.permute.xlu0 %41
    %vm43 = vcmp.eq.s32.totalorder %v42, 1
    %v44 = vperm.slane %v26, 0
    %v45 = vsel %vm43, %v44, %v38
    %v46 = vld [vmem:[%s2] sm:$0xff]
    %vm47 = vcmask 64512
    %v49 = vsel %vm47, %v24, 0
    %51 = vmatpush.msra.mxu0 0.0
    %52 = vmatpush.msra.mxu0 0.0
    %53 = vmatpush.msra.mxu0 0.0
    %54 = vmatpush.msra.mxu0 0.0
    %55 = vmatpush.msra.mxu0 0.0
    %56 = vmatpush.msra.mxu0 0.0
    %57 = vmatpush.msra.mxu0 0.0
    %58 = vmatpush.msra.mxu0 0.0
    %59 = vmatpush.msra.mxu0 0.0
    %60 = vmatpush.msra.mxu0 0.0
    %61 = vmatpush.msra.mxu0 0.0
    %62 = vmatpush.msra.mxu0 0.0
    %63 = vmatpush.msra.mxu0 0.0
    %64 = vmatpush.msra.mxu0 0.0
    %65 = vmatpush.msra.mxu0 0.0
    %66 = vmatpush.msra.mxu0 %v46
    %67 = vmatmul.f32.gmra.mxu0 %v49
    %v68 = vpop.f32.mrf.mxu0
    %v69 = vadd.f32 %v45, %v68
    %70 = vdwg.mxu0
    %v71 = vmax.f32 %v69, 0.0
    %v72 = vld [vmem:[%s4] sm:$0xff]
    %v73 = vld [vmem:[%s4 + $0x8] sm:$0xff]
    %v74 = vld [vmem:[%s4 + $0x10] sm:$0xff]
    %v75 = vld [vmem:[%s4 + $0x18] sm:$0xff]
    %v76 = vld [vmem:[%s4 + $0x20] sm:$0xff]
    %v77 = vld [vmem:[%s4 + $0x28] sm:$0xff]
    %v78 = vld [vmem:[%s4 + $0x30] sm:$0xff]
    %v79 = vld [vmem:[%s4 + $0x38] sm:$0xff]
    %v80 = vld [vmem:[%s4 + $0x40] sm:$0xff]
    %v81 = vld [vmem:[%s4 + $0x48] sm:$0xff]
    %v82 = vld [vmem:[%s4 + $0x50] sm:$0xff]
    %v83 = vld [vmem:[%s4 + $0x58] sm:$0xff]
    %v84 = vld [vmem:[%s4 + $0x60] sm:$0xff]
    %v85 = vld [vmem:[%s4 + $0x68] sm:$0xff]
    %v86 = vld [vmem:[%s4 + $0x70] sm:$0xff]
    %v87 = vld [vmem:[%s4 + $0x78] sm:$0xff]
    %v88 = vld [vmem:[%s5] sm:$0x1]
    %v90 = vperm.slane %v88, 0
    %92 = vmatpush.msra.mxu0 %v87
    %93 = vmatpush.msra.mxu0 %v86
    %94 = vmatpush.msra.mxu0 %v85
    %95 = vmatpush.msra.mxu0 %v84
    %96 = vmatpush.msra.mxu0 %v83
    %97 = vmatpush.msra.mxu0 %v82
    %98 = vmatpush.msra.mxu0 %v81
    %99 = vmatpush.msra.mxu0 %v80
    %100 = vmatpush.msra.mxu0 %v79
    %101 = vmatpush.msra.mxu0 %v78
    %102 = vmatpush.msra.mxu0 %v77
    %103 = vmatpush.msra.mxu0 %v76
    %104 = vmatpush.msra.mxu0 %v75
    %105 = vmatpush.msra.mxu0 %v74
    %106 = vmatpush.msra.mxu0 %v73
    %107 = vmatpush.msra.mxu0 %v72
    %108 = vmatmul.f32.gmra.mxu0 %v71
    %v109 = vpop.f32.mrf.mxu0
    %v110 = vadd.f32 %v90, %v109
    %111 = vdwg.mxu0
    %v112 = vtanh.pop %v110
    %vm113 = vcmask 31744
    %114 = vst.msk [vmem:[#allocation2] sm:$0xff] %vm113, %v112
    // Predicated region
    $region26: #{generator_forward.1} parent=1 // pred_check
      _
    $region27: #{generator_forward.1} parent=1 // pred_check_branch
      %116 = sbr.rel (0) target = $region29
    $region28: #{generator_forward.1} parent=1 // pred_region
      %118 = vsyncadd [#allocation3], 64
      %s119 = sshll.u32 [#allocation2], 4
      %s120 = int_to_ptr.vmem [resolvable:$true] %s119
      %s121 = sshll.u32 %s6, 4
      %s122 = int_to_ptr.hbm [resolvable:$true] %s121
      %127 = dma.vmem_to_hbm [thread:$0]  %s120, 64, %s122, [#allocation3], 64, 64, 4
    $region29: #{generator_forward.1} parent=1 // pred_fallthru
      _
    // Predicated region
    $region30: #{generator_forward.1} parent=1 // pred_check
      _
    $region31: #{generator_forward.1} parent=1 // pred_check_branch
      %129 = sbr.rel (0) target = $region33
    $region32: #{generator_forward.1} parent=1 // pred_region
      %131 = dma.done [#allocation3], 128
    $region33: #{generator_forward.1} parent=1 // pred_fallthru
      _
    %132 = vsyncpa [#allocation3], 1

</llo_original>
